<compile_context>
chip_gen: v7x
topology: tpu7x:2x2x1
jax: 0.10.0
libtpu: 0.0.40
codegen_flags: <defaults>
</compile_context>

<pallas_src>
import jax
import jax.numpy as jnp
from jax.experimental import pallas as pl
from jax.experimental.pallas import tpu as pltpu


# ---------------------------------------------------------------------------
# Kernel body
# ---------------------------------------------------------------------------
def _sin_gaussian_kernel(p_ref, x_ref, o_ref):
    x = x_ref[...]                      # (tm, tf) tile
    a = p_ref[0:1, :]                   # (1, tf) -> broadcasts over rows
    b = p_ref[1:2, :]
    c = p_ref[2:3, :]
    neg_inv = p_ref[3:4, :]             # precomputed -1/(2*d**2) (wrapper)
    y = a * jnp.sin(b * x) + c * jnp.exp((x * x) * neg_inv)
    o_ref[...] = y.astype(o_ref.dtype)


# ---------------------------------------------------------------------------
# Tile sizing
# ---------------------------------------------------------------------------
_TARGET_BLOCK_BYTES = 4 * 1024 * 1024   # ~4 MiB per x/out block


def _round_up(v, m):
    return ((v + m - 1) // m) * m


def _choose_tiles(N, F, itemsize):
    """Prefer full-width feature blocks; put the tiling on the row axis."""
    if 8 * F * itemsize > _TARGET_BLOCK_BYTES:
        # F alone blows the block budget: split it into lane-aligned chunks.
        tf = max(128, (_TARGET_BLOCK_BYTES // (8 * itemsize) // 128) * 128)
    else:
        # Full width: block covers the whole feature axis (contiguous DMA,
        # lane-dense stores). tf == F is always a legal block dim.
        tf = F
    # Fill the ~4 MiB budget with rows; multiple of 8, clamped to the array.
    tm = _TARGET_BLOCK_BYTES // (tf * itemsize)
    tm = max(8, (tm // 8) * 8)
    tm = min(tm, _round_up(N, 8))
    return tm, tf


def _row_axis_semantics():
    """CORE_PARALLEL on v7x (2 TensorCores/chip); plain PARALLEL otherwise."""
    try:
        kind = jax.devices()[0].device_kind.lower()
    except Exception:  # pragma: no cover - defensive
        kind = ""
    if "v7" in kind:
        return pltpu.CORE_PARALLEL
    return pltpu.PARALLEL


# ---------------------------------------------------------------------------
# Wrapper
# ---------------------------------------------------------------------------
def sin_gaussian_params_forward(x, a, b, c, d, *, tm=None, tf=None):
    """x: (N, F) float32; a, b, c, d: (1, F) float32 -> (N, F) float32."""
    N, F = x.shape
    itemsize = jnp.dtype(x.dtype).itemsize

    # Pack params into one (4, F) array; row 3 is the pre-folded gaussian
    # scale -1/(2*d**2) so the kernel does a single multiply per element.
    neg_inv = -0.5 / (d * d)
    params = jnp.concatenate([a, b, c, neg_inv], axis=0)  # (4, F)

    auto_tm, auto_tf = _choose_tiles(N, F, itemsize)
    if tm is None:
        tm = auto_tm
    if tf is None:
        tf = auto_tf

    grid = (pl.cdiv(N, tm), pl.cdiv(F, tf))

    param_spec = pl.BlockSpec((4, tf), lambda i, j: (0, j))
    x_spec = pl.BlockSpec((tm, tf), lambda i, j: (i, j))
    o_spec = pl.BlockSpec((tm, tf), lambda i, j: (i, j))

    cost = pl.CostEstimate(
        flops=8 * N * F,
        transcendentals=2 * N * F,                         # sin + exp
        bytes_accessed=2 * N * F * itemsize + 4 * F * itemsize,
    )

    return pl.pallas_call(
        _sin_gaussian_kernel,
        out_shape=jax.ShapeDtypeStruct((N, F), x.dtype),
        grid_spec=pltpu.PrefetchScalarGridSpec(
            num_scalar_prefetch=0,
            grid=grid,
            in_specs=[param_spec, x_spec],
            out_specs=o_spec,
        ),
        compiler_params=pltpu.CompilerParams(
            dimension_semantics=(_row_axis_semantics(), pltpu.PARALLEL),
            # ~4 MiB blocks, double-buffered in + out -> <= ~16-20 MiB.
            # 32 MiB scoped VMEM is safe on v5e/v6e and within v7x's 64 MiB.
            vmem_limit_bytes=32 * 1024 * 1024,
        ),
        cost_estimate=cost,
    )(params, x)


# ---------------------------------------------------------------------------
# Reference + tests
# ---------------------------------------------------------------------------
def _reference(x, a, b, c, d):
    return a * jnp.sin(b * x) + c * jnp.exp(-(x ** 2) / (2.0 * d ** 2))


def _make_params(key, num_features):
    ka, kb, kc, kd = jax.random.split(key, 4)
    # Matches torch.nn.init.normal_ with the module's default (mean, std).
    a = 0.5 + 0.01 * jax.random.normal(ka, (1, num_features), jnp.float32)
    b = 2.0 + 0.01 * jax.random.normal(kb, (1, num_features), jnp.float32)
    c = 0.01 + 0.001 * jax.random.normal(kc, (1, num_features), jnp.float32)
    d = 0.1 + 0.001 * jax.random.normal(kd, (1, num_features), jnp.float32)
    return a, b, c, d


def _check(x, a, b, c, d):
    y = jax.block_until_ready(sin_gaussian_params_forward(x, a, b, c, d))
    y_ref = _reference(x, a, b, c, d)
    assert y.shape == x.shape and y.dtype == x.dtype
    assert jnp.allclose(y, y_ref, atol=1e-5, rtol=1e-5)


if __name__ == "__main__":
    key = jax.random.PRNGKey(0)
    kp1, kx1, kx2, kp3, kx3, kp4, kx4 = jax.random.split(key, 7)

    # Primary case: lane-aligned feature dim, small batch of rows.
    a, b, c, d = _make_params(kp1, 128)
    x = jax.random.normal(kx1, (16, 128), jnp.float32)
    _check(x, a, b, c, d)

    # Ragged row count (exercises cdiv grid + padded last row block).
    x2 = jax.random.normal(kx2, (20, 128), jnp.float32)
    _check(x2, a, b, c, d)

    # Sub-128 feature dim (full-width block == array dim, masked-lane stores).
    a3, b3, c3, d3 = _make_params(kp3, 96)
    x3 = jax.random.normal(kx3, (12, 96), jnp.float32)
    _check(x3, a3, b3, c3, d3)

    # Non-multiple-of-128 feature dim wider than a vreg row.
    a4, b4, c4, d4 = _make_params(kp4, 200)
    x4 = jax.random.normal(kx4, (24, 200), jnp.float32)
    _check(x4, a4, b4, c4, d4)

    print("KERNEL_OK")
</pallas_src>

<mosaic_0001>
module attributes {stable_mosaic.version = 11 : i64} {
  func.func @_sin_gaussian_kernel(%arg0: i32, %arg1: i32, %arg2: memref<4x128xf32, #tpu.memory_space<vmem>>, %arg3: memref<16x128xf32, #tpu.memory_space<vmem>>, %arg4: memref<16x128xf32, #tpu.memory_space<vmem>>) attributes {dimension_semantics = [#tpu.dimension_semantics<parallel>, #tpu.dimension_semantics<parallel>], iteration_bounds = array<i64: 1, 1>, scalar_prefetch = 0 : i64, scratch_operands = 0 : i64, tpu.core_type = #tpu.core_type<tc>, window_params = [{transform_indices = @transform_0, window_bounds = array<i64: 4, 128>}, {transform_indices = @transform_1, window_bounds = array<i64: 16, 128>}, {transform_indices = @transform_2, window_bounds = array<i64: 16, 128>}]} {
    %c0 = arith.constant 0 : index
    %c0_0 = arith.constant 0 : index
    %0 = vector.load %arg3[%c0, %c0_0] : memref<16x128xf32, #tpu.memory_space<vmem>>, vector<16x128xf32>
    %c0_1 = arith.constant 0 : index
    %c0_2 = arith.constant 0 : index
    %1 = vector.load %arg2[%c0_1, %c0_2] : memref<4x128xf32, #tpu.memory_space<vmem>>, vector<1x128xf32>
    %c1 = arith.constant 1 : index
    %c0_3 = arith.constant 0 : index
    %2 = vector.load %arg2[%c1, %c0_3] : memref<4x128xf32, #tpu.memory_space<vmem>>, vector<1x128xf32>
    %c2 = arith.constant 2 : index
    %c0_4 = arith.constant 0 : index
    %3 = vector.load %arg2[%c2, %c0_4] : memref<4x128xf32, #tpu.memory_space<vmem>>, vector<1x128xf32>
    %c3 = arith.constant 3 : index
    %c0_5 = arith.constant 0 : index
    %4 = vector.load %arg2[%c3, %c0_5] : memref<4x128xf32, #tpu.memory_space<vmem>>, vector<1x128xf32>
    %5 = vector.broadcast %2 : vector<1x128xf32> to vector<16x128xf32>
    %6 = arith.mulf %5, %0 : vector<16x128xf32>
    %7 = math.sin %6 : vector<16x128xf32>
    %8 = vector.broadcast %1 : vector<1x128xf32> to vector<16x128xf32>
    %9 = arith.mulf %8, %7 : vector<16x128xf32>
    %10 = arith.mulf %0, %0 : vector<16x128xf32>
    %11 = vector.broadcast %4 : vector<1x128xf32> to vector<16x128xf32>
    %12 = arith.mulf %10, %11 : vector<16x128xf32>
    %13 = math.exp %12 : vector<16x128xf32>
    %14 = vector.broadcast %3 : vector<1x128xf32> to vector<16x128xf32>
    %15 = arith.mulf %14, %13 : vector<16x128xf32>
    %16 = arith.addf %9, %15 : vector<16x128xf32>
    %c0_6 = arith.constant 0 : index
    %c0_7 = arith.constant 0 : index
    %17 = vector.load %arg4[%c0_6, %c0_7] : memref<16x128xf32, #tpu.memory_space<vmem>>, vector<16x128xf32>
    tpu.vector_store %arg4[%c0_6, %c0_7], %16 {strides = array<i32>} : memref<16x128xf32, #tpu.memory_space<vmem>>, vector<16x128xf32>,
    return
  }
  func.func @transform_0(%arg0: i32, %arg1: i32) -> (i32, i32) {
    %c0_i32 = arith.constant 0 : i32
    %c0_i32_0 = arith.constant 0 : i32
    return %c0_i32, %arg1 : i32, i32
  }
  func.func @transform_1(%arg0: i32, %arg1: i32) -> (i32, i32) {
    %c0_i32 = arith.constant 0 : i32
    return %arg0, %arg1 : i32, i32
  }
  func.func @transform_2(%arg0: i32, %arg1: i32) -> (i32, i32) {
    %c0_i32 = arith.constant 0 : i32
    return %arg0, %arg1 : i32, i32
  }
}

</mosaic_0001>

<llo_original>
// kernel: tpu_custom_call.1
$region0: #{tpu_custom_call.1}
  #allocation0 [shape = 'u32[]', space=smem, size = 0x4, offset = 0x4, fixed_abs, tag = 'smem constant byte address 0x4 - core index']
  #allocation1 [shape = 'u32[144,128]{1,0:T(1,128)}', space=vmem, size = 0x12000, scoped, tag = 'internal scratch']
  %s0 = inlined_call_operand.hbm [shape: f32[4,128], index: 0, kind: input, shape index: {}]
  %s1 = inlined_call_operand.hbm [shape: f32[16,128], index: 1, kind: input, shape index: {}]
  %s2 = inlined_call_operand.hbm [shape: f32[16,128], index: 2, kind: output, shape index: {}]
  %s3 = sld [smem:[#allocation0]]
  $region26: #{tpu_custom_call.1} parent=0
    _
  %s5 = ssub.s32 1, %s3
  %s6 = scalar_select 0, %s5, %s3
  $region1: #{tpu_custom_call.1} parent=0
    #allocation2 [shape = 'u8[2048]{0}', space=vmem, size = 0x800, scoped, tag = 'input window, operand 0, single buffered']
    #allocation3 [shape = 's32[1]{0}', space=sflag, size = 0x4, scoped, tag = 'scoped memory for tpu_custom_call.1']
    #allocation4 [shape = 's32[1]{0}', space=sflag, size = 0x4, scoped, tag = 'scoped memory for tpu_custom_call.1']
    #allocation5 [shape = 'u8[8192]{0}', space=vmem, size = 0x2000, scoped, tag = 'input window, operand 1, single buffered']
    #allocation6 [shape = 's32[1]{0}', space=sflag, size = 0x4, scoped, tag = 'scoped memory for tpu_custom_call.1']
    #allocation7 [shape = 'u8[8192]{0}', space=vmem, size = 0x2000, scoped, tag = 'output window, operand 0, single buffered']
    %7 = vsyncpa [#allocation3], 0
    %8 = vsyncpa [#allocation6], 0
    %9 = vsyncpa [#allocation4], 0
    // Predicated region
    $region2: #{tpu_custom_call.1} parent=1 // pred_check
      _
    $region3: #{tpu_custom_call.1} parent=1 // pred_check_branch
      %11 = sbr.rel (0) target = $region5
    $region4: #{tpu_custom_call.1} parent=1 // pred_region
      %s13 = ssub.s32 64, 64
      %14 = vsyncadd [#allocation3], %s13
      %s16 = sshll.u32 [#allocation2], 4
      %s17 = int_to_ptr.vmem [resolvable:$true] %s16
      %19 = dma.hbm_to_vmem [thread:$0]  %s0, 64, %s17, [#allocation3]
    $region5: #{tpu_custom_call.1} parent=1 // pred_fallthru
      _
    // Predicated region
    $region6: #{tpu_custom_call.1} parent=1 // pred_check
      _
    $region7: #{tpu_custom_call.1} parent=1 // pred_check_branch
      %21 = sbr.rel (0) target = $region9
    $region8: #{tpu_custom_call.1} parent=1 // pred_region
      %s23 = ssub.s32 256, 256
      %24 = vsyncadd [#allocation6], %s23
      %s25 = sshll.u32 [#allocation5], 4
      %s26 = int_to_ptr.vmem [resolvable:$true] %s25
      %31 = dma.hbm_to_vmem [thread:$0]  %s1, 256, %s26, [#allocation6], 128, 128, 8
    $region9: #{tpu_custom_call.1} parent=1 // pred_fallthru
      _
    // Predicated region
    $region10: #{tpu_custom_call.1} parent=1 // pred_check
      _
    $region11: #{tpu_custom_call.1} parent=1 // pred_check_branch
      %33 = sbr.rel (0) target = $region13
    $region12: #{tpu_custom_call.1} parent=1 // pred_region
      %34 = dma.done [#allocation3], 64
    $region13: #{tpu_custom_call.1} parent=1 // pred_fallthru
      _
    // Predicated region
    $region14: #{tpu_custom_call.1} parent=1 // pred_check
      _
    $region15: #{tpu_custom_call.1} parent=1 // pred_check_branch
      %36 = sbr.rel (0) target = $region17
    $region16: #{tpu_custom_call.1} parent=1 // pred_region
      %37 = dma.done [#allocation6], 256
    $region17: #{tpu_custom_call.1} parent=1 // pred_fallthru
      _
    %v38 = vld [vmem:[#allocation5] sm:$0xff]
    %v39 = vld [vmem:[#allocation5 + $0x8] sm:$0xff]
    %v40 = vld [vmem:[#allocation2] sm:$0x1]
    %v41 = vld [vmem:[#allocation2 + $0x1] sm:$0x1]
    %v42 = vld [vmem:[#allocation2 + $0x2] sm:$0x1]
    %v43 = vld [vmem:[#allocation2 + $0x3] sm:$0x1]
    %v44 = vlaneseq
    %v45 = vshrl.u32 %v44, 7
    %v46 = vsub.s32 0, %v45
    %v47 = vrot.slane %v41, %v46
    %v48 = vmul.f32 %v47, %v38
    %v49 = vmul.f32 %v47, %v39
    %v50 = vand.u32 2147483647, %v48
    %vm51 = vcmp.le.f32.partialorder %v50, 0.7853982
    %vm52 = vcmp.lt.s32.totalorder %v48, 0
    %v53 = vand.u32 %v48, 2139095040
    %v54 = vshrl.u32 %v53, 23
    %v55 = vsub.s32 %v54, 127
    %v56 = vand.u32 2147483647, %v48
    %v57 = vand.u32 %v56, 8388607
    %v58 = vor.u32 %v57, 8388608
    %v59 = vsub.s32 0, %v58
    %v60 = vadd.s32 %v55, 1
    %vm61 = vcmp.gt.s32.totalorder %v60, 0
    %v62 = vsel %vm61, %v60, 0
    %v63 = vshrl.u32 %v62, 5
    %v64 = vand.u32 %v62, 31
    %v65 = vsub.s32 32, %v64
    %v66 = vshrl.u32 683565275, %v65
    %v67 = vshll.u32 683565275, %v64
    %v68 = vshrl.u32 2475754826, %v65
    %v69 = vor.u32 %v67, %v68
    %v70 = vshll.u32 2475754826, %v64
    %v71 = vshrl.u32 2131351028, %v65
    %v72 = vor.u32 %v70, %v71
    %v73 = vshll.u32 2131351028, %v64
    %v74 = vshrl.u32 2102212464, %v65
    %v75 = vor.u32 %v73, %v74
    %v76 = vshll.u32 2102212464, %v64
    %v77 = vshrl.u32 920167782, %v65
    %v78 = vor.u32 %v76, %v77
    %v79 = vshll.u32 920167782, %v64
    %v80 = vshrl.u32 1326507024, %v65
    %v81 = vor.u32 %v79, %v80
    %vm82 = vcmp.lt.s32.totalorder %v63, 1
    %vm83 = vcmp.lt.s32.totalorder %v63, 2
    %vm84 = vcmp.lt.s32.totalorder %v63, 3
    %vm85 = vcmp.lt.s32.totalorder %v63, 4
    %v86 = vsel %vm82, %v66, %v69
    %v87 = vsel %vm85, %v75, 2102212464
    %v88 = vsel %vm84, %v72, %v87
    %v89 = vsel %vm83, %v86, %v88
    %v90 = vsel %vm82, %v69, %v72
    %v91 = vsel %vm85, %v78, 920167782
    %v92 = vsel %vm84, %v75, %v91
    %v93 = vsel %vm83, %v90, %v92
    %v94 = vsel %vm82, %v72, %v75
    %v95 = vsel %vm85, %v81, 1326507024
    %v96 = vsel %vm84, %v78, %v95
    %v97 = vsel %vm83, %v94, %v96
    %v98 = vshll.u32 %v58, 8
    %v99 = vmul.u32.u64.compose %v98, %v97
    %v100 = vextract.low.u32 %v99
    %v101 = vextract.high.u32 %v99
    %v102 = vmul.u32.u64.compose %v98, %v93
    %v103 = vextract.low.u32 %v102
    %v104 = vextract.high.u32 %v102
    %v105 = vmul.u32 %v98, %v89
    %v106 = vadd.s32 %v101, %v103
    %vm107 = vc.u32 %v101, %v103
    %v108 = vadd.s32 %v104, 1
    %v109 = vsel %vm107, %v108, %v104
    %v110 = vadd.s32 %v105, %v109
    %v111 = vadd.s32 %v110, 536870912
    %v112 = vshrl.u32 %v111, 30
    %v113 = vshll.u32 %v112, 30
    %v114 = vsub.s32 %v110, %v113
    %vm115 = vcmp.lt.s32.totalorder %v114, 0
    %v116 = vsub.s32 0, %v114
    %v117 = vsel %vm115, %v116, %v114
    %v118 = vclz %v117
    %v119 = vsub.s32 %v118, 2
    %vm120 = vcmp.gt.s32.totalorder 0, %v119
    %v121 = vsel %vm120, 0, %v119
    %v122 = vsub.s32 32, %v121
    %v123 = vshll.u32 %v114, %v121
    %v124 = vshrl.u32 %v106, %v122
    %v125 = vor.u32 %v123, %v124
    %v126 = vsub.s32 4294967266, %v121
    %v127 = vadd.s32 %v126, 127
    %v128 = vshll.u32 %v127, 23
    %v129 = vor.u32 4788187, %v128
    %v130 = vand.u32 2147483647, %v129
    %v132 = vcvt.s32.f32 %v125
    %v133 = vmul.f32 %v132, %v130
    %v134 = vxor.u32 %v133, 2147483648
    %v135 = vsel %vm52, %v134, %v133
    %v136 = vsub.s32 4, %v112
    %v137 = vsel %vm52, %v136, %v112
    %v138 = vsel %vm51, %v48, %v135
    %v139 = vsel %vm51, 0, %v137
    %v140 = vcosq.f32.pop %v138
    %v141 = vsinq.f32.pop %v138
    %vm142 = vweird.f32 %v48
    %v143 = vadd.s32 %v139, 3
    %v144 = vand.u32 %v143, 3
    %vm145 = vcmp.lt.s32.totalorder %v144, 2
    %vm146 = vcmp.eq.s32.totalorder %v144, 0
    %v147 = vxor.u32 %v141, 2147483648
    %v148 = vsel %vm146, %v140, %v147
    %vm149 = vcmp.eq.s32.totalorder %v144, 2
    %v150 = vxor.u32 %v140, 2147483648
    %v151 = vsel %vm149, %v150, %v141
    %v152 = vsel %vm145, %v148, %v151
    %v153 = vsel %vm142, nan, %v152
    %v154 = vand.u32 2147483647, %v49
    %vm155 = vcmp.le.f32.partialorder %v154, 0.7853982
    %vm156 = vcmp.lt.s32.totalorder %v49, 0
    %v157 = vand.u32 %v49, 2139095040
    %v158 = vshrl.u32 %v157, 23
    %v159 = vsub.s32 %v158, 127
    %v160 = vand.u32 2147483647, %v49
    %v161 = vand.u32 %v160, 8388607
    %v162 = vor.u32 %v161, 8388608
    %v163 = vsub.s32 0, %v162
    %v164 = vadd.s32 %v159, 1
    %vm165 = vcmp.gt.s32.totalorder %v164, 0
    %v166 = vsel %vm165, %v164, 0
    %v167 = vshrl.u32 %v166, 5
    %v168 = vand.u32 %v166, 31
    %v169 = vsub.s32 32, %v168
    %v170 = vshrl.u32 683565275, %v169
    %v171 = vshll.u32 683565275, %v168
    %v172 = vshrl.u32 2475754826, %v169
    %v173 = vor.u32 %v171, %v172
    %v174 = vshll.u32 2475754826, %v168
    %v175 = vshrl.u32 2131351028, %v169
    %v176 = vor.u32 %v174, %v175
    %v177 = vshll.u32 2131351028, %v168
    %v178 = vshrl.u32 2102212464, %v169
    %v179 = vor.u32 %v177, %v178
    %v180 = vshll.u32 2102212464, %v168
    %v181 = vshrl.u32 920167782, %v169
    %v182 = vor.u32 %v180, %v181
    %v183 = vshll.u32 920167782, %v168
    %v184 = vshrl.u32 1326507024, %v169
    %v185 = vor.u32 %v183, %v184
    %vm186 = vcmp.lt.s32.totalorder %v167, 1
    %vm187 = vcmp.lt.s32.totalorder %v167, 2
    %vm188 = vcmp.lt.s32.totalorder %v167, 3
    %vm189 = vcmp.lt.s32.totalorder %v167, 4
    %v190 = vsel %vm186, %v170, %v173
    %v191 = vsel %vm189, %v179, 2102212464
    %v192 = vsel %vm188, %v176, %v191
    %v193 = vsel %vm187, %v190, %v192
    %v194 = vsel %vm186, %v173, %v176
    %v195 = vsel %vm189, %v182, 920167782
    %v196 = vsel %vm188, %v179, %v195
    %v197 = vsel %vm187, %v194, %v196
    %v198 = vsel %vm186, %v176, %v179
    %v199 = vsel %vm189, %v185, 1326507024
    %v200 = vsel %vm188, %v182, %v199
    %v201 = vsel %vm187, %v198, %v200
    %v202 = vshll.u32 %v162, 8
    %v203 = vmul.u32.u64.compose %v202, %v201
    %v204 = vextract.low.u32 %v203
    %v205 = vextract.high.u32 %v203
    %v206 = vmul.u32.u64.compose %v202, %v197
    %v207 = vextract.low.u32 %v206
    %v208 = vextract.high.u32 %v206
    %v209 = vmul.u32 %v202, %v193
    %v210 = vadd.s32 %v205, %v207
    %vm211 = vc.u32 %v205, %v207
    %v212 = vadd.s32 %v208, 1
    %v213 = vsel %vm211, %v212, %v208
    %v214 = vadd.s32 %v209, %v213
    %v215 = vadd.s32 %v214, 536870912
    %v216 = vshrl.u32 %v215, 30
    %v217 = vshll.u32 %v216, 30
    %v218 = vsub.s32 %v214, %v217
    %vm219 = vcmp.lt.s32.totalorder %v218, 0
    %v220 = vsub.s32 0, %v218
    %v221 = vsel %vm219, %v220, %v218
    %v222 = vclz %v221
    %v223 = vsub.s32 %v222, 2
    %vm224 = vcmp.gt.s32.totalorder 0, %v223
    %v225 = vsel %vm224, 0, %v223
    %v226 = vsub.s32 32, %v225
    %v227 = vshll.u32 %v218, %v225
    %v228 = vshrl.u32 %v210, %v226
    %v229 = vor.u32 %v227, %v228
    %v230 = vsub.s32 4294967266, %v225
    %v231 = vadd.s32 %v230, 127
    %v232 = vshll.u32 %v231, 23
    %v233 = vor.u32 4788187, %v232
    %v234 = vand.u32 2147483647, %v233
    %v236 = vcvt.s32.f32 %v229
    %v237 = vmul.f32 %v236, %v234
    %v238 = vxor.u32 %v237, 2147483648
    %v239 = vsel %vm156, %v238, %v237
    %v240 = vsub.s32 4, %v216
    %v241 = vsel %vm156, %v240, %v216
    %v242 = vsel %vm155, %v49, %v239
    %v243 = vsel %vm155, 0, %v241
    %v244 = vcosq.f32.pop %v242
    %v245 = vsinq.f32.pop %v242
    %vm246 = vweird.f32 %v49
    %v247 = vadd.s32 %v243, 3
    %v248 = vand.u32 %v247, 3
    %vm249 = vcmp.lt.s32.totalorder %v248, 2
    %vm250 = vcmp.eq.s32.totalorder %v248, 0
    %v251 = vxor.u32 %v245, 2147483648
    %v252 = vsel %vm250, %v244, %v251
    %vm253 = vcmp.eq.s32.totalorder %v248, 2
    %v254 = vxor.u32 %v244, 2147483648
    %v255 = vsel %vm253, %v254, %v245
    %v256 = vsel %vm249, %v252, %v255
    %v257 = vsel %vm246, nan, %v256
    %v258 = vlaneseq
    %v259 = vshrl.u32 %v258, 7
    %v260 = vsub.s32 0, %v259
    %v261 = vrot.slane %v40, %v260
    %v262 = vmul.f32 %v261, %v153
    %v263 = vmul.f32 %v261, %v257
    %v264 = vmul.f32 %v38, %v38
    %v265 = vmul.f32 %v39, %v39
    %v266 = vlaneseq
    %v267 = vshrl.u32 %v266, 7
    %v268 = vsub.s32 0, %v267
    %v269 = vrot.slane %v43, %v268
    %v270 = vmul.f32 %v264, %v269
    %v271 = vmul.f32 %v265, %v269
    %v272 = vmul.f32 %v270, 1.442695
    %v273 = vpow.pop %v272
    %v274 = vmul.f32 %v271, 1.442695
    %v275 = vpow.pop %v274
    %v276 = vlaneseq
    %v277 = vshrl.u32 %v276, 7
    %v278 = vsub.s32 0, %v277
    %v279 = vrot.slane %v42, %v278
    %v280 = vmul.f32 %v279, %v273
    %v281 = vmul.f32 %v279, %v275
    %v282 = vadd.f32 %v262, %v280
    %v283 = vadd.f32 %v263, %v281
    %284 = vst [vmem:[#allocation7] sm:$0xff] %v282
    %285 = vst [vmem:[#allocation7 + $0x8] sm:$0xff] %v283
    // Predicated region
    $region18: #{tpu_custom_call.1} parent=1 // pred_check
      _
    $region19: #{tpu_custom_call.1} parent=1 // pred_check_branch
      %287 = sbr.rel (0) target = $region21
    $region20: #{tpu_custom_call.1} parent=1 // pred_region
      %s289 = ssub.s32 256, 256
      %290 = vsyncadd [#allocation4], %s289
      %s291 = sshll.u32 [#allocation7], 4
      %s292 = int_to_ptr.vmem [resolvable:$true] %s291
      %297 = dma.vmem_to_hbm [thread:$0]  %s292, 256, %s2, [#allocation4], 128, 128, 8
    $region21: #{tpu_custom_call.1} parent=1 // pred_fallthru
      _
    // Predicated region
    $region22: #{tpu_custom_call.1} parent=1 // pred_check
      _
    $region23: #{tpu_custom_call.1} parent=1 // pred_check_branch
      %299 = sbr.rel (0) target = $region25
    $region24: #{tpu_custom_call.1} parent=1 // pred_region
      %300 = dma.done [#allocation4], 256
    $region25: #{tpu_custom_call.1} parent=1 // pred_fallthru
      _
    %301 = vsyncpa [#allocation3], 1
    %302 = vsyncpa [#allocation6], 1
    %303 = vsyncpa [#allocation4], 1

</llo_original>
